<compile_context>
chip_gen: v5e
topology: v5e:2x2
jax: 0.10.0
libtpu: 0.0.40
codegen_flags: <defaults>
</compile_context>

<pallas_src>
import jax
import jax.numpy as jnp
from jax.experimental import pallas as pl
from jax.experimental.pallas import tpu as pltpu


def _qcnn_conv_kernel(y_ref, w_ref, b_ref, o_ref):
    """One grid step: (C2, C) @ (C, T) GEMM + bias, f32 accumulation on the MXU.

    y_ref : (1, C, T)  bf16   rotated activations tile (T on lanes)
    w_ref : (C2, C)    bf16   conv weight (resident)
    b_ref : (C2, 1)    f32    conv bias   (resident)
    o_ref : (1, C2, T) out_dtype
    """
    z = jnp.dot(w_ref[...], y_ref[0], preferred_element_type=jnp.float32)
    o_ref[0] = (z + b_ref[...]).astype(o_ref.dtype)


def _choose_spatial_tile(hw, c_in, c_out, out_itemsize, batch,
                         vmem_budget_bytes=16 * 1024 * 1024, max_tile=4096):
    """Spatial tile T: multiple of 128, sized from a VMEM byte budget.

    Budget covers the double-buffered input tile (bf16), the double-buffered output
    tile (out_itemsize) and the (double-buffered) resident bf16 weight + f32 bias.
    A 16 MiB budget is safe on every generation (v7x: 64 MiB physical VMEM).
    """
    resident = 2 * (c_out * c_in * 2 + c_out * 4)
    per_col = 2 * (c_in * 2 + c_out * out_itemsize)
    t = max(vmem_budget_bytes - resident, 128 * per_col) // max(per_col, 1)
    t = min(int(t), max_tile)
    t = max(128, (t // 128) * 128)
    # Megacore / v7x: guarantee >= 2 grid steps along a "parallel" axis when batch == 1.
    if batch == 1 and hw > 128:
        t = min(t, max(128, ((hw - 1) // 128) * 128))
    return t


def qcnn_conv2d_forward(x, weight, bias, theta, *, out_dtype=jnp.float32,
                        force_pallas=False):
    """QCNNConv2d forward for the 1x1 / stride-1 / no-pad / groups-1 configuration.

    x      : (N, C, H, W) float32
    weight : (C2, C, 1, 1) conv weight
    bias   : (C2,) conv bias or None
    theta  : (C,) rotation-gate angles
    """
    # TODO(synk): general kernel_size>1 / stride / padding / dilation / groups conv path not implemented.
    N, C, H, W = x.shape
    C2, Cw, kh, kw = weight.shape
    assert (Cw, kh, kw) == (C, 1, 1), "only the 1x1, stride-1, groups=1 path is implemented"
    HW = H * W

    cos = jnp.cos(theta.astype(jnp.float32)).reshape(1, C, 1, 1)
    sin = jnp.sin(theta.astype(jnp.float32)).reshape(1, C, 1, 1)
    if bias is None:
        bias = jnp.zeros((C2,), jnp.float32)

    # Small-problem fallback: a single fused XLA kernel beats pallas_call fixed cost.
    total_bytes = 4 * N * HW * (C + C2)
    if not force_pallas and total_bytes < (2 << 20):
        y = x * cos + jnp.flip(x, axis=-1) * sin
        z = jnp.einsum("oc,nchw->nohw", weight.reshape(C2, C), y)
        return (z + bias.reshape(1, C2, 1, 1)).astype(out_dtype)

    # Fused XLA producer: rotation gate + flatten + bf16 cast (single activation stream).
    y = (x * cos + jnp.flip(x, axis=-1) * sin).reshape(N, C, HW)

    out_itemsize = jnp.dtype(out_dtype).itemsize
    t_hw = _choose_spatial_tile(HW, C, C2, out_itemsize, N)
    hw_pad = ((HW + t_hw - 1) // t_hw) * t_hw
    if hw_pad != HW:
        y = jnp.pad(y, ((0, 0), (0, 0), (0, hw_pad - HW)))
    y = y.astype(jnp.bfloat16)                                   # lane-dense (N, C, HW_pad)

    w2 = weight.reshape(C2, C).astype(jnp.bfloat16)
    b_col = bias.reshape(C2, 1).astype(jnp.float32)

    grid = (N, hw_pad // t_hw)

    out = pl.pallas_call(
        _qcnn_conv_kernel,
        out_shape=jax.ShapeDtypeStruct((N, C2, hw_pad), out_dtype),
        grid_spec=pltpu.PrefetchScalarGridSpec(
            num_scalar_prefetch=0,
            grid=grid,
            in_specs=[
                pl.BlockSpec((1, C, t_hw), lambda n, s: (n, 0, s)),
                pl.BlockSpec((C2, C), lambda n, s: (0, 0)),      # resident weight
                pl.BlockSpec((C2, 1), lambda n, s: (0, 0)),      # resident bias
            ],
            out_specs=pl.BlockSpec((1, C2, t_hw), lambda n, s: (n, 0, s)),
        ),
        compiler_params=pltpu.CompilerParams(
            dimension_semantics=("parallel", "parallel"),        # batch + spatial both shardable
            vmem_limit_bytes=32 * 1024 * 1024,                   # tiles budgeted to <=16 MiB
        ),
    )(y, w2, b_col)

    out = out[:, :, :HW]                                         # drop spatial padding
    return out.reshape(N, C2, H, W)


def _reference(x, weight, bias, theta):
    """Pure-JAX f32 reference of the module forward."""
    C2, C = weight.shape[0], weight.shape[1]
    cos = jnp.cos(theta).reshape(1, C, 1, 1)
    sin = jnp.sin(theta).reshape(1, C, 1, 1)
    y = x * cos + jnp.flip(x, axis=-1) * sin
    z = jnp.einsum("oc,nchw->nohw", weight.reshape(C2, C), y)
    return z + bias.reshape(1, C2, 1, 1)


if __name__ == "__main__":
    N, C1, C2, H, W = 2, 4, 8, 16, 16

    key = jax.random.PRNGKey(0)
    k_theta, k_w, k_b, k_x = jax.random.split(key, 4)

    theta = jax.random.uniform(k_theta, (C1,), jnp.float32) * 3.14159   # nn.Parameter(rand(c1)*pi)
    weight = jax.random.normal(k_w, (C2, C1, 1, 1), jnp.float32) * 0.1  # Conv2d weight
    bias = jax.random.normal(k_b, (C2,), jnp.float32) * 0.1             # Conv2d bias (default bias=True)
    x = jax.random.normal(k_x, (N, C1, H, W), jnp.float32)
    # qubits_real / qubits_imag and apply_hadamard() only mutate parameters; they do not
    # influence the returned tensor, so they are omitted from the forward computation.

    out = jax.block_until_ready(
        qcnn_conv2d_forward(x, weight, bias, theta, force_pallas=True))
    ref = _reference(x, weight, bias, theta)

    assert out.shape == (N, C2, H, W)
    assert out.dtype == jnp.float32
    # bf16 activations/weights on the MXU (f32 accumulation) -> compare against the f32
    # reference with a bf16-level tolerance.
    max_err = float(jnp.max(jnp.abs(out - ref)))
    assert jnp.allclose(out, ref, rtol=2e-2, atol=2e-2), max_err

    print("KERNEL_OK")
</pallas_src>

<mosaic_0001>
module attributes {stable_mosaic.version = 11 : i64} {
  func.func @_qcnn_conv_kernel(%arg0: i32, %arg1: i32, %arg2: memref<1x4x4096xbf16, #tpu.memory_space<vmem>>, %arg3: memref<8x4xbf16, #tpu.memory_space<vmem>>, %arg4: memref<8x1xf32, #tpu.memory_space<vmem>>, %arg5: memref<1x8x4096xf32, #tpu.memory_space<vmem>>) attributes {dimension_semantics = [#tpu.dimension_semantics<parallel>, #tpu.dimension_semantics<parallel>], iteration_bounds = array<i64: 2, 1>, scalar_prefetch = 0 : i64, scratch_operands = 0 : i64, tpu.core_type = #tpu.core_type<tc>, window_params = [{transform_indices = @transform_0, window_bounds = array<i64: 1, 4, 4096>}, {pipeline_mode = #tpu.pipeline_mode<synchronous>, transform_indices = @transform_1, window_bounds = array<i64: 8, 4>}, {pipeline_mode = #tpu.pipeline_mode<synchronous>, transform_indices = @transform_2, window_bounds = array<i64: 8, 1>}, {transform_indices = @transform_3, window_bounds = array<i64: 1, 8, 4096>}]} {
    %c0 = arith.constant 0 : index
    %c0_0 = arith.constant 0 : index
    %0 = vector.load %arg3[%c0, %c0_0] : memref<8x4xbf16, #tpu.memory_space<vmem>>, vector<8x4xbf16>
    %c0_1 = arith.constant 0 : index
    %c0_2 = arith.constant 0 : index
    %c0_3 = arith.constant 0 : index
    %1 = vector.load %arg2[%c0_1, %c0_2, %c0_3] : memref<1x4x4096xbf16, #tpu.memory_space<vmem>>, vector<1x4x4096xbf16>
    %2 = vector.shape_cast %1 : vector<1x4x4096xbf16> to vector<4x4096xbf16>
    %cst = arith.constant dense<0.000000e+00> : vector<8x4096xf32>
    %3 = tpu.matmul %0, %2, %cst {dimension_numbers = #tpu.dot_dimension_numbers<[1], [0], [0], [1], [0, 0, 1, 1], [], []>} : vector<8x4xbf16>, vector<4x4096xbf16>, vector<8x4096xf32> -> vector<8x4096xf32>
    %c0_4 = arith.constant 0 : index
    %c0_5 = arith.constant 0 : index
    %4 = vector.load %arg4[%c0_4, %c0_5] : memref<8x1xf32, #tpu.memory_space<vmem>>, vector<8x1xf32>
    %5 = vector.broadcast %4 : vector<8x1xf32> to vector<8x4096xf32>
    %6 = arith.addf %3, %5 : vector<8x4096xf32>
    %c0_6 = arith.constant 0 : index
    %c0_7 = arith.constant 0 : index
    %c0_8 = arith.constant 0 : index
    %7 = vector.load %arg5[%c0_6, %c0_7, %c0_8] : memref<1x8x4096xf32, #tpu.memory_space<vmem>>, vector<1x8x4096xf32>
    %8 = vector.shape_cast %7 : vector<1x8x4096xf32> to vector<8x4096xf32>
    %9 = vector.shape_cast %6 : vector<8x4096xf32> to vector<1x8x4096xf32>
    tpu.vector_store %arg5[%c0_6, %c0_7, %c0_8], %9 {strides = array<i32>} : memref<1x8x4096xf32, #tpu.memory_space<vmem>>, vector<1x8x4096xf32>,
    return
  }
  func.func @transform_0(%arg0: i32, %arg1: i32) -> (i32, i32, i32) {
    %c0_i32 = arith.constant 0 : i32
    %c0_i32_0 = arith.constant 0 : i32
    return %arg0, %c0_i32, %arg1 : i32, i32, i32
  }
  func.func @transform_1(%arg0: i32, %arg1: i32) -> (i32, i32) {
    %c0_i32 = arith.constant 0 : i32
    %c0_i32_0 = arith.constant 0 : i32
    %c0_i32_1 = arith.constant 0 : i32
    return %c0_i32, %c0_i32_0 : i32, i32
  }
  func.func @transform_2(%arg0: i32, %arg1: i32) -> (i32, i32) {
    %c0_i32 = arith.constant 0 : i32
    %c0_i32_0 = arith.constant 0 : i32
    %c0_i32_1 = arith.constant 0 : i32
    return %c0_i32, %c0_i32_0 : i32, i32
  }
  func.func @transform_3(%arg0: i32, %arg1: i32) -> (i32, i32, i32) {
    %c0_i32 = arith.constant 0 : i32
    %c0_i32_0 = arith.constant 0 : i32
    return %arg0, %c0_i32, %arg1 : i32, i32, i32
  }
}

</mosaic_0001>

<llo_original>
// kernel: tpu_custom_call.1
$region0: #{tpu_custom_call.1}
  #allocation0 [shape = 'u32[]', space=smem, size = 0x4, offset = 0x4, fixed_abs, tag = 'smem constant byte address 0x4 - core index']
  #allocation1 [shape = 'u32[72,128]{1,0:T(1,128)}', space=vmem, size = 0x9000, scoped, tag = 'internal scratch']
  %s0 = inlined_call_operand.hbm [shape: bf16[2,4,4096], index: 0, kind: input, shape index: {}]
  %s1 = inlined_call_operand.vmem [shape: bf16[8,4], index: 1, kind: input, shape index: {}]
  %s2 = inlined_call_operand.vmem [shape: f32[8,1], index: 2, kind: input, shape index: {}]
  %s3 = inlined_call_operand.hbm [shape: f32[2,8,4096], index: 3, kind: output, shape index: {}]
  %s4 = sld [smem:[#allocation0]]
  $region49: #{tpu_custom_call.1} parent=0
    _
  %s6 = ssub.s32 1, %s4
  %s7 = scalar_select 0, %s6, %s4
  $region1: #{tpu_custom_call.1} parent=0
    #allocation2 [shape = 'u8[65536]{0}', space=vmem, size = 0x10000, scoped, tag = 'input window, operand 0']
    #allocation3 [shape = 's32[2]{0}', space=sflag, size = 0x8, scoped, tag = 'scoped memory for tpu_custom_call.1']
    #allocation4 [shape = 's32[2]{0}', space=sflag, size = 0x8, scoped, tag = 'scoped memory for tpu_custom_call.1']
    #allocation5 [shape = 'u8[262144]{0}', space=vmem, size = 0x40000, scoped, tag = 'output window, operand 0']
    %8 = vsyncpa [#allocation3], 0
    %s9 = scalar_lea.sflag [#allocation3], 1
    %10 = vsyncpa %s9, 0
    %11 = vsyncpa [#allocation4], 0
    %s12 = scalar_lea.sflag [#allocation4], 1
    %13 = vsyncpa %s12, 0
    loop: start=0, step=1, limit=4
    $region2: #{tpu_custom_call.1} parent=1 // loop_pre_header
      _
    $region3: #{tpu_custom_call.1} parent=1 // loop_header
      %s15 = sphi 0, %s19
      %p16 = scmp.ge.s32.totalorder %s15, 4
      %s22 = sphi 0, %s34
      %s23 = sphi 0, %s30
      %s24 = sphi 0, %s22
      %s25 = sphi 0, %s23
      %s26 = sphi 0, %s24
      %s27 = sphi 0, %s25
      %s39 = sphi 0, %s41
      %s42 = sphi 0, %s39
      %s43 = sphi 0, %s42
      %s59 = sphi 0, %s43
      %s63 = sphi 0, %s63
      %s65 = sphi 0, %s63
      %s66 = sphi 0, %s65
      %s80 = sphi 0, %s66
      %s84 = sphi 0, %s84
      %s86 = sphi 0, %s84
      %s87 = sphi 0, %s86
      %s101 = sphi 0, %s87
      %s109 = sphi 0, %s111
      %s112 = sphi 0, %s109
      %s113 = sphi 0, %s112
      %s129 = sphi 0, %s113
    $region4: #{tpu_custom_call.1} parent=1 // loop_header_branch
      %18 = sbr.rel (%p16) target = $region8
    $region5: #{tpu_custom_call.1} parent=1 // loop_body
      %s20 = ssub.s32 %s15, 1
      %s21 = ssub.s32 %s15, 2
      %s28 = sadd.s32 1, %s23
      %p29 = scmp.ge.s32.totalorder %s28, 1
      %s30 = scalar_select %p29, 0, %s28
      %s31 = sadd.s32 1, %s22
      %s32 = scalar_select %p29, %s31, %s22
      %p33 = scmp.ge.s32.totalorder %s32, 2
      %s34 = scalar_select %p33, 0, %s32
      %s35 = ssub.s32 %s22, %s34
      %s36 = ssub.s32 %s23, %s30
      %s37 = sor.u32 %s35, %s36
      %p38 = scmp.eq.s32.totalorder %s37, 0
      %s40 = sadd.s32 %s39, 1
      %s41 = scalar_select %p38, %s39, %s40
      %p44 = pneg %p38
      %p45 = scmp.eq.s32.totalorder %s15, 1
      %p46 = por %p44, %p45
      %p47 = scmp.ne.s32.totalorder %s39, %s42
      %p48 = scmp.eq.s32.totalorder %s15, 0
      %p49 = por %p47, %p48
      %p50 = scmp.ne.s32.totalorder %s39, %s42
      %p51 = scmp.eq.s32.totalorder %s20, 1
      %p52 = por %p50, %p51
      %p53 = scmp.ne.s32.totalorder %s42, %s43
      %p54 = scmp.eq.s32.totalorder %s20, 0
      %p55 = por %p53, %p54
      %p56 = scmp.ne.s32.totalorder %s42, %s43
      %p57 = scmp.eq.s32.totalorder %s21, 1
      %p58 = por %p56, %p57
      %p60 = scmp.ne.s32.totalorder %s43, %s59
      %p61 = scmp.eq.s32.totalorder %s21, 0
      %p62 = por %p60, %p61
      %s64 = sadd.s32 %s63, 1
      %p67 = scmp.eq.s32.totalorder %s15, 1
      %p68 = scmp.ne.s32.totalorder %s63, %s65
      %p69 = scmp.eq.s32.totalorder %s15, 0
      %p70 = por %p68, %p69
      %p71 = scmp.ne.s32.totalorder %s63, %s65
      %p72 = scmp.eq.s32.totalorder %s20, 1
      %p73 = por %p71, %p72
      %p74 = scmp.ne.s32.totalorder %s65, %s66
      %p75 = scmp.eq.s32.totalorder %s20, 0
      %p76 = por %p74, %p75
      %p77 = scmp.ne.s32.totalorder %s65, %s66
      %p78 = scmp.eq.s32.totalorder %s21, 1
      %p79 = por %p77, %p78
      %p81 = scmp.ne.s32.totalorder %s66, %s80
      %p82 = scmp.eq.s32.totalorder %s21, 0
      %p83 = por %p81, %p82
      %s85 = sadd.s32 %s84, 1
      %p88 = scmp.eq.s32.totalorder %s15, 1
      %p89 = scmp.ne.s32.totalorder %s84, %s86
      %p90 = scmp.eq.s32.totalorder %s15, 0
      %p91 = por %p89, %p90
      %p92 = scmp.ne.s32.totalorder %s84, %s86
      %p93 = scmp.eq.s32.totalorder %s20, 1
      %p94 = por %p92, %p93
      %p95 = scmp.ne.s32.totalorder %s86, %s87
      %p96 = scmp.eq.s32.totalorder %s20, 0
      %p97 = por %p95, %p96
      %p98 = scmp.ne.s32.totalorder %s86, %s87
      %p99 = scmp.eq.s32.totalorder %s21, 1
      %p100 = por %p98, %p99
      %p102 = scmp.ne.s32.totalorder %s87, %s101
      %p103 = scmp.eq.s32.totalorder %s21, 0
      %p104 = por %p102, %p103
      %s105 = ssub.s32 %s22, %s34
      %s106 = ssub.s32 %s23, %s30
      %s107 = sor.u32 %s105, %s106
      %p108 = scmp.eq.s32.totalorder %s107, 0
      %s110 = sadd.s32 %s109, 1
      %s111 = scalar_select %p108, %s109, %s110
      %p114 = pneg %p108
      %p115 = scmp.eq.s32.totalorder %s15, 1
      %p116 = por %p114, %p115
      %p117 = scmp.ne.s32.totalorder %s109, %s112
      %p118 = scmp.eq.s32.totalorder %s15, 0
      %p119 = por %p117, %p118
      %p120 = scmp.ne.s32.totalorder %s109, %s112
      %p121 = scmp.eq.s32.totalorder %s20, 1
      %p122 = por %p120, %p121
      %p123 = scmp.ne.s32.totalorder %s112, %s113
      %p124 = scmp.eq.s32.totalorder %s20, 0
      %p125 = por %p123, %p124
      %p126 = scmp.ne.s32.totalorder %s112, %s113
      %p127 = scmp.eq.s32.totalorder %s21, 1
      %p128 = por %p126, %p127
      %p130 = scmp.ne.s32.totalorder %s113, %s129
      %p131 = scmp.eq.s32.totalorder %s21, 0
      %p132 = por %p130, %p131
      %p133 = scmp.le.s32.totalorder 1, %s15
      %p134 = scmp.lt.s32.totalorder %s15, 3
      %p135 = pnand %p133, %p134
      %p136 = pneg %p135
      // Predicated region
      $region9: #{tpu_custom_call.1} parent=5 // pred_check
        _
      $region10: #{tpu_custom_call.1} parent=5 // pred_check_branch
        %138 = sbr.rel (%p135) target = $region12
      $region11: #{tpu_custom_call.1} parent=5 // pred_region
        %s139 = ssub.s32 %s15, 1
        // Predicated region
        $region13: #{tpu_custom_call.1} parent=11 // pred_check
          %p140 = pneg %p76
        $region14: #{tpu_custom_call.1} parent=11 // pred_check_branch
          %142 = sbr.rel (%p140) target = $region16
        $region15: #{tpu_custom_call.1} parent=11 // pred_region
          _
        $region16: #{tpu_custom_call.1} parent=11 // pred_fallthru
          _
        // Predicated region
        $region17: #{tpu_custom_call.1} parent=11 // pred_check
          %p143 = pneg %p97
        $region18: #{tpu_custom_call.1} parent=11 // pred_check_branch
          %145 = sbr.rel (%p143) target = $region20
        $region19: #{tpu_custom_call.1} parent=11 // pred_region
          _
        $region20: #{tpu_custom_call.1} parent=11 // pred_fallthru
          _
      $region12: #{tpu_custom_call.1} parent=5 // pred_fallthru
        _
      %p146 = scmp.lt.s32.totalorder %s15, 2
      // Predicated region
      $region21: #{tpu_custom_call.1} parent=5 // pred_check
        %p147 = pneg %p146
      $region22: #{tpu_custom_call.1} parent=5 // pred_check_branch
        %149 = sbr.rel (%p147) target = $region24
      $region23: #{tpu_custom_call.1} parent=5 // pred_region
        // Predicated region
        $region25: #{tpu_custom_call.1} parent=23 // pred_check
          %p150 = pneg %p49
        $region26: #{tpu_custom_call.1} parent=23 // pred_check_branch
          %152 = sbr.rel (%p150) target = $region28
        $region27: #{tpu_custom_call.1} parent=23 // pred_region
          %s153 = sand.u32 %s39, 1
          %s154 = scalar_lea.sflag [#allocation3], %s153
          %s155 = sand.u32 %s39, 1
          %s156 = smul.addr %s155, 64
          %s157 = scalar_lea.vmem [#allocation2], %s156
          %s158 = smul.u32 32, %s23
          %160 = vsyncadd %s154, 0
          %s161 = smul.addr %s22, 32
          %s162 = sadd.s32 %s158, %s161
          %s163 = smul.addr %s162, 2
          %s164 = scalar_lea.hbm %s0, %s163
          %s166 = sshll.u32 %s164, 4
          %s167 = int_to_ptr.hbm [resolvable:$true] %s166
          %s168 = sshll.u32 %s157, 4
          %s169 = int_to_ptr.vmem [resolvable:$true] %s168
          %171 = dma.hbm_to_vmem [thread:$0]  %s167, 1024, %s169, %s154
        $region28: #{tpu_custom_call.1} parent=23 // pred_fallthru
          _
      $region24: #{tpu_custom_call.1} parent=5 // pred_fallthru
        _
      %p172 = scmp.le.s32.totalorder 1, %s15
      %p173 = scmp.lt.s32.totalorder %s15, 3
      %p174 = pnand %p172, %p173
      %p175 = pneg %p174
      // Predicated region
      $region29: #{tpu_custom_call.1} parent=5 // pred_check
        _
      $region30: #{tpu_custom_call.1} parent=5 // pred_check_branch
        %177 = sbr.rel (%p174) target = $region32
      $region31: #{tpu_custom_call.1} parent=5 // pred_region
        %s178 = ssub.s32 %s15, 1
        %s179 = sand.u32 %s42, 1
        %s180 = scalar_lea.sflag [#allocation3], %s179
        %s181 = sand.u32 %s42, 1
        %s182 = smul.addr %s181, 64
        %s183 = scalar_lea.vmem [#allocation2], %s182
        // Predicated region
        $region33: #{tpu_custom_call.1} parent=31 // pred_check
          %p184 = pneg %p55
        $region34: #{tpu_custom_call.1} parent=31 // pred_check_branch
          %186 = sbr.rel (%p184) target = $region36
        $region35: #{tpu_custom_call.1} parent=31 // pred_region
          %188 = dma.done %s180, 1024
        $region36: #{tpu_custom_call.1} parent=31 // pred_fallthru
          _
        %s189 = sand.u32 %s42, 1
        %s190 = scalar_lea.sflag [#allocation3], %s189
        %s191 = sand.u32 %s42, 1
        %s192 = smul.addr %s191, 64
        %s193 = scalar_lea.vmem [#allocation2], %s192
        %p194 = pneg %p55
        %p195 = pneg %p52
        %p196 = pneg %p76
        %p197 = pneg %p73
        %p198 = pneg %p97
        %p199 = pneg %p94
        %p200 = pneg %p125
        %p201 = pneg %p122
        %s202 = sand.u32 %s112, 1
        %s203 = scalar_lea.sflag [#allocation4], %s202
        %s204 = sand.u32 %s112, 1
        %s205 = smul.addr %s204, 256
        %s206 = scalar_lea.vmem [#allocation5], %s205
        %s207 = smul.u32 32, %s25
        %s208 = smul.u32 32, %s25
        %v210 = vld [vmem:[%s1] sm:$0xf]
        %v211 = vld [vmem:[%s183] sm:$0xff]
        %v212 = vld [vmem:[%s183 + $0x8] sm:$0xff]
        %v213 = vld [vmem:[%s183 + $0x10] sm:$0xff]
        %v214 = vld [vmem:[%s183 + $0x18] sm:$0xff]
        %v215 = vld [vmem:[%s183 + $0x20] sm:$0xff]
        %v216 = vld [vmem:[%s183 + $0x28] sm:$0xff]
        %v217 = vld [vmem:[%s183 + $0x30] sm:$0xff]
        %v218 = vld [vmem:[%s183 + $0x38] sm:$0xff]
        %v219 = vld [vmem:[%s2] sm:$0xff]
        %221 = vset.pattern.permute.xlu0 0
        %222 = vperm.xlu0 %221, %v219
        %v223 = vpop.permute.xlu0 %222
        %226 = vst [vmem:[#allocation1] ss:$4 sm:$0xff] %v211
        %s228 = scalar_lea.vmem [#allocation1], 32
        %229 = vst [vmem:[%s228] ss:$4 sm:$0xff] %v212
        %v230 = vld.sshfl [vmem:[#allocation1] sm:$0xff pattern:$0x73625140]
        %v231 = vld.sshfl [vmem:[#allocation1 + $0x8] sm:$0xff pattern:$0x73625140]
        %v232 = vld.sshfl [vmem:[#allocation1 + $0x10] sm:$0xff pattern:$0x73625140]
        %v233 = vld.sshfl [vmem:[#allocation1 + $0x18] sm:$0xff pattern:$0x73625140]
        %v234 = vld.sshfl [vmem:[#allocation1 + $0x20] sm:$0xff pattern:$0x73625140]
        %v235 = vld.sshfl [vmem:[#allocation1 + $0x28] sm:$0xff pattern:$0x73625140]
        %v236 = vld.sshfl [vmem:[#allocation1 + $0x30] sm:$0xff pattern:$0x73625140]
        %v237 = vld.sshfl [vmem:[#allocation1 + $0x38] sm:$0xff pattern:$0x73625140]
        %239 = vst [vmem:[#allocation1] ss:$4 sm:$0xff] %v213
        %241 = vst [vmem:[%s228] ss:$4 sm:$0xff] %v214
        %v242 = vld.sshfl [vmem:[#allocation1] sm:$0xff pattern:$0x73625140]
        %v243 = vld.sshfl [vmem:[#allocation1 + $0x8] sm:$0xff pattern:$0x73625140]
        %v244 = vld.sshfl [vmem:[#allocation1 + $0x10] sm:$0xff pattern:$0x73625140]
        %v245 = vld.sshfl [vmem:[#allocation1 + $0x18] sm:$0xff pattern:$0x73625140]
        %v246 = vld.sshfl [vmem:[#allocation1 + $0x20] sm:$0xff pattern:$0x73625140]
        %v247 = vld.sshfl [vmem:[#allocation1 + $0x28] sm:$0xff pattern:$0x73625140]
        %v248 = vld.sshfl [vmem:[#allocation1 + $0x30] sm:$0xff pattern:$0x73625140]
        %v249 = vld.sshfl [vmem:[#allocation1 + $0x38] sm:$0xff pattern:$0x73625140]
        %251 = vst [vmem:[#allocation1] ss:$4 sm:$0xff] %v215
        %253 = vst [vmem:[%s228] ss:$4 sm:$0xff] %v216
        %v254 = vld.sshfl [vmem:[#allocation1] sm:$0xff pattern:$0x73625140]
        %v255 = vld.sshfl [vmem:[#allocation1 + $0x8] sm:$0xff pattern:$0x73625140]
        %v256 = vld.sshfl [vmem:[#allocation1 + $0x10] sm:$0xff pattern:$0x73625140]
        %v257 = vld.sshfl [vmem:[#allocation1 + $0x18] sm:$0xff pattern:$0x73625140]
        %v258 = vld.sshfl [vmem:[#allocation1 + $0x20] sm:$0xff pattern:$0x73625140]
        %v259 = vld.sshfl [vmem:[#allocation1 + $0x28] sm:$0xff pattern:$0x73625140]
        %v260 = vld.sshfl [vmem:[#allocation1 + $0x30] sm:$0xff pattern:$0x73625140]
        %v261 = vld.sshfl [vmem:[#allocation1 + $0x38] sm:$0xff pattern:$0x73625140]
        %263 = vst [vmem:[#allocation1] ss:$4 sm:$0xff] %v217
        %265 = vst [vmem:[%s228] ss:$4 sm:$0xff] %v218
        %v266 = vld.sshfl [vmem:[#allocation1] sm:$0xff pattern:$0x73625140]
        %v267 = vld.sshfl [vmem:[#allocation1 + $0x8] sm:$0xff pattern:$0x73625140]
        %v268 = vld.sshfl [vmem:[#allocation1 + $0x10] sm:$0xff pattern:$0x73625140]
        %v269 = vld.sshfl [vmem:[#allocation1 + $0x18] sm:$0xff pattern:$0x73625140]
        %v270 = vld.sshfl [vmem:[#allocation1 + $0x20] sm:$0xff pattern:$0x73625140]
        %v271 = vld.sshfl [vmem:[#allocation1 + $0x28] sm:$0xff pattern:$0x73625140]
        %v272 = vld.sshfl [vmem:[#allocation1 + $0x30] sm:$0xff pattern:$0x73625140]
        %v273 = vld.sshfl [vmem:[#allocation1 + $0x38] sm:$0xff pattern:$0x73625140]
        %vm274 = vcmask 31744
        %v276 = vsel %vm274, %v210, 0
        %vm278 = vcmask 1041408
        %v279 = vsel %vm278, %v230, 0
        %v281 = vsel %vm278, %v231, 0
        %v283 = vsel %vm278, %v232, 0
        %v285 = vsel %vm278, %v233, 0
        %v287 = vsel %vm278, %v234, 0
        %v289 = vsel %vm278, %v235, 0
        %v291 = vsel %vm278, %v236, 0
        %v293 = vsel %vm278, %v237, 0
        %v295 = vsel %vm278, %v242, 0
        %v297 = vsel %vm278, %v243, 0
        %v299 = vsel %vm278, %v244, 0
        %v301 = vsel %vm278, %v245, 0
        %v303 = vsel %vm278, %v246, 0
        %v305 = vsel %vm278, %v247, 0
        %v307 = vsel %vm278, %v248, 0
        %v309 = vsel %vm278, %v249, 0
        %v311 = vsel %vm278, %v254, 0
        %v313 = vsel %vm278, %v255, 0
        %v315 = vsel %vm278, %v256, 0
        %v317 = vsel %vm278, %v257, 0
        %v319 = vsel %vm278, %v258, 0
        %v321 = vsel %vm278, %v259, 0
        %v323 = vsel %vm278, %v260, 0
        %v325 = vsel %vm278, %v261, 0
        %v327 = vsel %vm278, %v266, 0
        %v329 = vsel %vm278, %v267, 0
        %v331 = vsel %vm278, %v268, 0
        %v333 = vsel %vm278, %v269, 0
        %v335 = vsel %vm278, %v270, 0
        %v337 = vsel %vm278, %v271, 0
        %v339 = vsel %vm278, %v272, 0
        %v341 = vsel %vm278, %v273, 0
        %343 = vmatpush.bf16.msra.mxu0 0
        %344 = vmatpush.bf16.msra.mxu0 0
        %345 = vmatpush.bf16.msra.mxu0 0
        %346 = vmatpush.bf16.msra.mxu0 0
        %347 = vmatpush.bf16.msra.mxu0 0
        %348 = vmatpush.bf16.msra.mxu0 0
        %349 = vmatpush.bf16.msra.mxu0 0
        %350 = vmatpush.bf16.msra.mxu0 %v279
        %351 = vmatmul.bf16.gmra.mxu0 %v276
        %v352 = vpop.f32.mrf.mxu0
        %v353 = vadd.f32 %v223, %v352
        %v354 = vpop.f32.mrf.mxu0
        %355 = vdwg.mxu0
        %356 = vmatpush.bf16.msra.mxu0 0
        %357 = vmatpush.bf16.msra.mxu0 0
        %358 = vmatpush.bf16.msra.mxu0 0
        %359 = vmatpush.bf16.msra.mxu0 0
        %360 = vmatpush.bf16.msra.mxu0 0
        %361 = vmatpush.bf16.msra.mxu0 0
        %362 = vmatpush.bf16.msra.mxu0 0
        %363 = vmatpush.bf16.msra.mxu0 %v281
        %364 = vmatmul.bf16.gmra.mxu0 %v276
        %v365 = vpop.f32.mrf.mxu0
        %v366 = vadd.f32 %v223, %v365
        %v367 = vpop.f32.mrf.mxu0
        %368 = vdwg.mxu0
        %369 = vmatpush.bf16.msra.mxu0 0
        %370 = vmatpush.bf16.msra.mxu0 0
        %371 = vmatpush.bf16.msra.mxu0 0
        %372 = vmatpush.bf16.msra.mxu0 0
        %373 = vmatpush.bf16.msra.mxu0 0
        %374 = vmatpush.bf16.msra.mxu0 0
        %375 = vmatpush.bf16.msra.mxu0 0
        %376 = vmatpush.bf16.msra.mxu0 %v283
        %377 = vmatmul.bf16.gmra.mxu0 %v276
        %v378 = vpop.f32.mrf.mxu0
        %v379 = vadd.f32 %v223, %v378
        %v380 = vpop.f32.mrf.mxu0
        %381 = vdwg.mxu0
        %382 = vmatpush.bf16.msra.mxu0 0
        %383 = vmatpush.bf16.msra.mxu0 0
        %384 = vmatpush.bf16.msra.mxu0 0
        %385 = vmatpush.bf16.msra.mxu0 0
        %386 = vmatpush.bf16.msra.mxu0 0
        %387 = vmatpush.bf16.msra.mxu0 0
        %388 = vmatpush.bf16.msra.mxu0 0
        %389 = vmatpush.bf16.msra.mxu0 %v285
        %390 = vmatmul.bf16.gmra.mxu0 %v276
        %v391 = vpop.f32.mrf.mxu0
        %v392 = vadd.f32 %v223, %v391
        %v393 = vpop.f32.mrf.mxu0
        %394 = vdwg.mxu0
        %395 = vmatpush.bf16.msra.mxu0 0
        %396 = vmatpush.bf16.msra.mxu0 0
        %397 = vmatpush.bf16.msra.mxu0 0
        %398 = vmatpush.bf16.msra.mxu0 0
        %399 = vmatpush.bf16.msra.mxu0 0
        %400 = vmatpush.bf16.msra.mxu0 0
        %401 = vmatpush.bf16.msra.mxu0 0
        %402 = vmatpush.bf16.msra.mxu0 %v287
        %403 = vmatmul.bf16.gmra.mxu0 %v276
        %v404 = vpop.f32.mrf.mxu0
        %v405 = vadd.f32 %v223, %v404
        %v406 = vpop.f32.mrf.mxu0
        %407 = vdwg.mxu0
        %408 = vmatpush.bf16.msra.mxu0 0
        %409 = vmatpush.bf16.msra.mxu0 0
        %410 = vmatpush.bf16.msra.mxu0 0
        %411 = vmatpush.bf16.msra.mxu0 0
        %412 = vmatpush.bf16.msra.mxu0 0
        %413 = vmatpush.bf16.msra.mxu0 0
        %414 = vmatpush.bf16.msra.mxu0 0
        %415 = vmatpush.bf16.msra.mxu0 %v289
        %416 = vmatmul.bf16.gmra.mxu0 %v276
        %v417 = vpop.f32.mrf.mxu0
        %v418 = vadd.f32 %v223, %v417
        %v419 = vpop.f32.mrf.mxu0
        %420 = vdwg.mxu0
        %421 = vmatpush.bf16.msra.mxu0 0
        %422 = vmatpush.bf16.msra.mxu0 0
        %423 = vmatpush.bf16.msra.mxu0 0
        %424 = vmatpush.bf16.msra.mxu0 0
        %425 = vmatpush.bf16.msra.mxu0 0
        %426 = vmatpush.bf16.msra.mxu0 0
        %427 = vmatpush.bf16.msra.mxu0 0
        %428 = vmatpush.bf16.msra.mxu0 %v291
        %429 = vmatmul.bf16.gmra.mxu0 %v276
        %v430 = vpop.f32.mrf.mxu0
        %v431 = vadd.f32 %v223, %v430
        %v432 = vpop.f32.mrf.mxu0
        %433 = vdwg.mxu0
        %434 = vmatpush.bf16.msra.mxu0 0
        %435 = vmatpush.bf16.msra.mxu0 0
        %436 = vmatpush.bf16.msra.mxu0 0
        %437 = vmatpush.bf16.msra.mxu0 0
        %438 = vmatpush.bf16.msra.mxu0 0
        %439 = vmatpush.bf16.msra.mxu0 0
        %440 = vmatpush.bf16.msra.mxu0 0
        %441 = vmatpush.bf16.msra.mxu0 %v293
        %442 = vmatmul.bf16.gmra.mxu0 %v276
        %v443 = vpop.f32.mrf.mxu0
        %v444 = vadd.f32 %v223, %v443
        %v445 = vpop.f32.mrf.mxu0
        %446 = vdwg.mxu0
        %447 = vmatpush.bf16.msra.mxu0 0
        %448 = vmatpush.bf16.msra.mxu0 0
        %449 = vmatpush.bf16.msra.mxu0 0
        %450 = vmatpush.bf16.msra.mxu0 0
        %451 = vmatpush.bf16.msra.mxu0 0
        %452 = vmatpush.bf16.msra.mxu0 0
        %453 = vmatpush.bf16.msra.mxu0 0
        %454 = vmatpush.bf16.msra.mxu0 %v295
        %455 = vmatmul.bf16.gmra.mxu0 %v276
        %v456 = vpop.f32.mrf.mxu0
        %v457 = vadd.f32 %v223, %v456
        %v458 = vpop.f32.mrf.mxu0
        %459 = vdwg.mxu0
        %460 = vmatpush.bf16.msra.mxu0 0
        %461 = vmatpush.bf16.msra.mxu0 0
        %462 = vmatpush.bf16.msra.mxu0 0
        %463 = vmatpush.bf16.msra.mxu0 0
        %464 = vmatpush.bf16.msra.mxu0 0
        %465 = vmatpush.bf16.msra.mxu0 0
        %466 = vmatpush.bf16.msra.mxu0 0
        %467 = vmatpush.bf16.msra.mxu0 %v297
        %468 = vmatmul.bf16.gmra.mxu0 %v276
        %v469 = vpop.f32.mrf.mxu0
        %v470 = vadd.f32 %v223, %v469
        %v471 = vpop.f32.mrf.mxu0
        %472 = vdwg.mxu0
        %473 = vmatpush.bf16.msra.mxu0 0
        %474 = vmatpush.bf16.msra.mxu0 0
        %475 = vmatpush.bf16.msra.mxu0 0
        %476 = vmatpush.bf16.msra.mxu0 0
        %477 = vmatpush.bf16.msra.mxu0 0
        %478 = vmatpush.bf16.msra.mxu0 0
        %479 = vmatpush.bf16.msra.mxu0 0
        %480 = vmatpush.bf16.msra.mxu0 %v299
        %481 = vmatmul.bf16.gmra.mxu0 %v276
        %v482 = vpop.f32.mrf.mxu0
        %v483 = vadd.f32 %v223, %v482
        %v484 = vpop.f32.mrf.mxu0
        %485 = vdwg.mxu0
        %486 = vmatpush.bf16.msra.mxu0 0
        %487 = vmatpush.bf16.msra.mxu0 0
        %488 = vmatpush.bf16.msra.mxu0 0
        %489 = vmatpush.bf16.msra.mxu0 0
        %490 = vmatpush.bf16.msra.mxu0 0
        %491 = vmatpush.bf16.msra.mxu0 0
        %492 = vmatpush.bf16.msra.mxu0 0
        %493 = vmatpush.bf16.msra.mxu0 %v301
        %494 = vmatmul.bf16.gmra.mxu0 %v276
        %v495 = vpop.f32.mrf.mxu0
        %v496 = vadd.f32 %v223, %v495
        %v497 = vpop.f32.mrf.mxu0
        %498 = vdwg.mxu0
        %499 = vmatpush.bf16.msra.mxu0 0
        %500 = vmatpush.bf16.msra.mxu0 0
        %501 = vmatpush.bf16.msra.mxu0 0
        %502 = vmatpush.bf16.msra.mxu0 0
        %503 = vmatpush.bf16.msra.mxu0 0
        %504 = vmatpush.bf16.msra.mxu0 0
        %505 = vmatpush.bf16.msra.mxu0 0
        %506 = vmatpush.bf16.msra.mxu0 %v303
        %507 = vmatmul.bf16.gmra.mxu0 %v276
        %v508 = vpop.f32.mrf.mxu0
        %v509 = vadd.f32 %v223, %v508
        %v510 = vpop.f32.mrf.mxu0
        %511 = vdwg.mxu0
        %512 = vmatpush.bf16.msra.mxu0 0
        %513 = vmatpush.bf16.msra.mxu0 0
        %514 = vmatpush.bf16.msra.mxu0 0
        %515 = vmatpush.bf16.msra.mxu0 0
        %516 = vmatpush.bf16.msra.mxu0 0
        %517 = vmatpush.bf16.msra.mxu0 0
        %518 = vmatpush.bf16.msra.mxu0 0
        %519 = vmatpush.bf16.msra.mxu0 %v305
        %520 = vmatmul.bf16.gmra.mxu0 %v276
        %v521 = vpop.f32.mrf.mxu0
        %v522 = vadd.f32 %v223, %v521
        %v523 = vpop.f32.mrf.mxu0
        %524 = vdwg.mxu0
        %525 = vmatpush.bf16.msra.mxu0 0
        %526 = vmatpush.bf16.msra.mxu0 0
        %527 = vmatpush.bf16.msra.mxu0 0
        %528 = vmatpush.bf16.msra.mxu0 0
        %529 = vmatpush.bf16.msra.mxu0 0
        %530 = vmatpush.bf16.msra.mxu0 0
        %531 = vmatpush.bf16.msra.mxu0 0
        %532 = vmatpush.bf16.msra.mxu0 %v307
        %533 = vmatmul.bf16.gmra.mxu0 %v276
        %v534 = vpop.f32.mrf.mxu0
        %v535 = vadd.f32 %v223, %v534
        %v536 = vpop.f32.mrf.mxu0
        %537 = vdwg.mxu0
        %538 = vmatpush.bf16.msra.mxu0 0
        %539 = vmatpush.bf16.msra.mxu0 0
        %540 = vmatpush.bf16.msra.mxu0 0
        %541 = vmatpush.bf16.msra.mxu0 0
        %542 = vmatpush.bf16.msra.mxu0 0
        %543 = vmatpush.bf16.msra.mxu0 0
        %544 = vmatpush.bf16.msra.mxu0 0
        %545 = vmatpush.bf16.msra.mxu0 %v309
        %546 = vmatmul.bf16.gmra.mxu0 %v276
        %v547 = vpop.f32.mrf.mxu0
        %v548 = vadd.f32 %v223, %v547
        %v549 = vpop.f32.mrf.mxu0
        %550 = vdwg.mxu0
        %551 = vmatpush.bf16.msra.mxu0 0
        %552 = vmatpush.bf16.msra.mxu0 0
        %553 = vmatpush.bf16.msra.mxu0 0
        %554 = vmatpush.bf16.msra.mxu0 0
        %555 = vmatpush.bf16.msra.mxu0 0
        %556 = vmatpush.bf16.msra.mxu0 0
        %557 = vmatpush.bf16.msra.mxu0 0
        %558 = vmatpush.bf16.msra.mxu0 %v311
        %559 = vmatmul.bf16.gmra.mxu0 %v276
        %v560 = vpop.f32.mrf.mxu0
        %v561 = vadd.f32 %v223, %v560
        %v562 = vpop.f32.mrf.mxu0
        %563 = vdwg.mxu0
        %564 = vmatpush.bf16.msra.mxu0 0
        %565 = vmatpush.bf16.msra.mxu0 0
        %566 = vmatpush.bf16.msra.mxu0 0
        %567 = vmatpush.bf16.msra.mxu0 0
        %568 = vmatpush.bf16.msra.mxu0 0
        %569 = vmatpush.bf16.msra.mxu0 0
        %570 = vmatpush.bf16.msra.mxu0 0
        %571 = vmatpush.bf16.msra.mxu0 %v313
        %572 = vmatmul.bf16.gmra.mxu0 %v276
        %v573 = vpop.f32.mrf.mxu0
        %v574 = vadd.f32 %v223, %v573
        %v575 = vpop.f32.mrf.mxu0
        %576 = vdwg.mxu0
        %577 = vmatpush.bf16.msra.mxu0 0
        %578 = vmatpush.bf16.msra.mxu0 0
        %579 = vmatpush.bf16.msra.mxu0 0
        %580 = vmatpush.bf16.msra.mxu0 0
        %581 = vmatpush.bf16.msra.mxu0 0
        %582 = vmatpush.bf16.msra.mxu0 0
        %583 = vmatpush.bf16.msra.mxu0 0
        %584 = vmatpush.bf16.msra.mxu0 %v315
        %585 = vmatmul.bf16.gmra.mxu0 %v276
        %v586 = vpop.f32.mrf.mxu0
        %v587 = vadd.f32 %v223, %v586
        %v588 = vpop.f32.mrf.mxu0
        %589 = vdwg.mxu0
        %590 = vmatpush.bf16.msra.mxu0 0
        %591 = vmatpush.bf16.msra.mxu0 0
        %592 = vmatpush.bf16.msra.mxu0 0
        %593 = vmatpush.bf16.msra.mxu0 0
        %594 = vmatpush.bf16.msra.mxu0 0
        %595 = vmatpush.bf16.msra.mxu0 0
        %596 = vmatpush.bf16.msra.mxu0 0
        %597 = vmatpush.bf16.msra.mxu0 %v317
        %598 = vmatmul.bf16.gmra.mxu0 %v276
        %v599 = vpop.f32.mrf.mxu0
        %v600 = vadd.f32 %v223, %v599
        %v601 = vpop.f32.mrf.mxu0
        %602 = vdwg.mxu0
        %603 = vmatpush.bf16.msra.mxu0 0
        %604 = vmatpush.bf16.msra.mxu0 0
        %605 = vmatpush.bf16.msra.mxu0 0
        %606 = vmatpush.bf16.msra.mxu0 0
        %607 = vmatpush.bf16.msra.mxu0 0
        %608 = vmatpush.bf16.msra.mxu0 0
        %609 = vmatpush.bf16.msra.mxu0 0
        %610 = vmatpush.bf16.msra.mxu0 %v319
        %611 = vmatmul.bf16.gmra.mxu0 %v276
        %v612 = vpop.f32.mrf.mxu0
        %v613 = vadd.f32 %v223, %v612
        %v614 = vpop.f32.mrf.mxu0
        %615 = vdwg.mxu0
        %616 = vmatpush.bf16.msra.mxu0 0
        %617 = vmatpush.bf16.msra.mxu0 0
        %618 = vmatpush.bf16.msra.mxu0 0
        %619 = vmatpush.bf16.msra.mxu0 0
        %620 = vmatpush.bf16.msra.mxu0 0
        %621 = vmatpush.bf16.msra.mxu0 0
        %622 = vmatpush.bf16.msra.mxu0 0
        %623 = vmatpush.bf16.msra.mxu0 %v321
        %624 = vmatmul.bf16.gmra.mxu0 %v276
        %v625 = vpop.f32.mrf.mxu0
        %v626 = vadd.f32 %v223, %v625
        %v627 = vpop.f32.mrf.mxu0
        %628 = vdwg.mxu0
        %629 = vmatpush.bf16.msra.mxu0 0
        %630 = vmatpush.bf16.msra.mxu0 0
        %631 = vmatpush.bf16.msra.mxu0 0
        %632 = vmatpush.bf16.msra.mxu0 0
        %633 = vmatpush.bf16.msra.mxu0 0
        %634 = vmatpush.bf16.msra.mxu0 0
        %635 = vmatpush.bf16.msra.mxu0 0
        %636 = vmatpush.bf16.msra.mxu0 %v323
        %637 = vmatmul.bf16.gmra.mxu0 %v276
        %v638 = vpop.f32.mrf.mxu0
        %v639 = vadd.f32 %v223, %v638
        %v640 = vpop.f32.mrf.mxu0
        %641 = vdwg.mxu0
        %642 = vmatpush.bf16.msra.mxu0 0
        %643 = vmatpush.bf16.msra.mxu0 0
        %644 = vmatpush.bf16.msra.mxu0 0
        %645 = vmatpush.bf16.msra.mxu0 0
        %646 = vmatpush.bf16.msra.mxu0 0
        %647 = vmatpush.bf16.msra.mxu0 0
        %648 = vmatpush.bf16.msra.mxu0 0
        %649 = vmatpush.bf16.msra.mxu0 %v325
        %650 = vmatmul.bf16.gmra.mxu0 %v276
        %v651 = vpop.f32.mrf.mxu0
        %v652 = vadd.f32 %v223, %v651
        %v653 = vpop.f32.mrf.mxu0
        %654 = vdwg.mxu0
        %655 = vmatpush.bf16.msra.mxu0 0
        %656 = vmatpush.bf16.msra.mxu0 0
        %657 = vmatpush.bf16.msra.mxu0 0
        %658 = vmatpush.bf16.msra.mxu0 0
        %659 = vmatpush.bf16.msra.mxu0 0
        %660 = vmatpush.bf16.msra.mxu0 0
        %661 = vmatpush.bf16.msra.mxu0 0
        %662 = vmatpush.bf16.msra.mxu0 %v327
        %663 = vmatmul.bf16.gmra.mxu0 %v276
        %v664 = vpop.f32.mrf.mxu0
        %v665 = vadd.f32 %v223, %v664
        %v666 = vpop.f32.mrf.mxu0
        %667 = vdwg.mxu0
        %668 = vmatpush.bf16.msra.mxu0 0
        %669 = vmatpush.bf16.msra.mxu0 0
        %670 = vmatpush.bf16.msra.mxu0 0
        %671 = vmatpush.bf16.msra.mxu0 0
        %672 = vmatpush.bf16.msra.mxu0 0
        %673 = vmatpush.bf16.msra.mxu0 0
        %674 = vmatpush.bf16.msra.mxu0 0
        %675 = vmatpush.bf16.msra.mxu0 %v329
        %676 = vmatmul.bf16.gmra.mxu0 %v276
        %v677 = vpop.f32.mrf.mxu0
        %v678 = vadd.f32 %v223, %v677
        %v679 = vpop.f32.mrf.mxu0
        %680 = vdwg.mxu0
        %681 = vmatpush.bf16.msra.mxu0 0
        %682 = vmatpush.bf16.msra.mxu0 0
        %683 = vmatpush.bf16.msra.mxu0 0
        %684 = vmatpush.bf16.msra.mxu0 0
        %685 = vmatpush.bf16.msra.mxu0 0
        %686 = vmatpush.bf16.msra.mxu0 0
        %687 = vmatpush.bf16.msra.mxu0 0
        %688 = vmatpush.bf16.msra.mxu0 %v331
        %689 = vmatmul.bf16.gmra.mxu0 %v276
        %v690 = vpop.f32.mrf.mxu0
        %v691 = vadd.f32 %v223, %v690
        %v692 = vpop.f32.mrf.mxu0
        %693 = vdwg.mxu0
        %694 = vmatpush.bf16.msra.mxu0 0
        %695 = vmatpush.bf16.msra.mxu0 0
        %696 = vmatpush.bf16.msra.mxu0 0
        %697 = vmatpush.bf16.msra.mxu0 0
        %698 = vmatpush.bf16.msra.mxu0 0
        %699 = vmatpush.bf16.msra.mxu0 0
        %700 = vmatpush.bf16.msra.mxu0 0
        %701 = vmatpush.bf16.msra.mxu0 %v333
        %702 = vmatmul.bf16.gmra.mxu0 %v276
        %v703 = vpop.f32.mrf.mxu0
        %v704 = vadd.f32 %v223, %v703
        %v705 = vpop.f32.mrf.mxu0
        %706 = vdwg.mxu0
        %707 = vmatpush.bf16.msra.mxu0 0
        %708 = vmatpush.bf16.msra.mxu0 0
        %709 = vmatpush.bf16.msra.mxu0 0
        %710 = vmatpush.bf16.msra.mxu0 0
        %711 = vmatpush.bf16.msra.mxu0 0
        %712 = vmatpush.bf16.msra.mxu0 0
        %713 = vmatpush.bf16.msra.mxu0 0
        %714 = vmatpush.bf16.msra.mxu0 %v335
        %715 = vmatmul.bf16.gmra.mxu0 %v276
        %v716 = vpop.f32.mrf.mxu0
        %v717 = vadd.f32 %v223, %v716
        %v718 = vpop.f32.mrf.mxu0
        %719 = vdwg.mxu0
        %720 = vmatpush.bf16.msra.mxu0 0
        %721 = vmatpush.bf16.msra.mxu0 0
        %722 = vmatpush.bf16.msra.mxu0 0
        %723 = vmatpush.bf16.msra.mxu0 0
        %724 = vmatpush.bf16.msra.mxu0 0
        %725 = vmatpush.bf16.msra.mxu0 0
        %726 = vmatpush.bf16.msra.mxu0 0
        %727 = vmatpush.bf16.msra.mxu0 %v337
        %728 = vmatmul.bf16.gmra.mxu0 %v276
        %v729 = vpop.f32.mrf.mxu0
        %v730 = vadd.f32 %v223, %v729
        %v731 = vpop.f32.mrf.mxu0
        %732 = vdwg.mxu0
        %733 = vmatpush.bf16.msra.mxu0 0
        %734 = vmatpush.bf16.msra.mxu0 0
        %735 = vmatpush.bf16.msra.mxu0 0
        %736 = vmatpush.bf16.msra.mxu0 0
        %737 = vmatpush.bf16.msra.mxu0 0
        %738 = vmatpush.bf16.msra.mxu0 0
        %739 = vmatpush.bf16.msra.mxu0 0
        %740 = vmatpush.bf16.msra.mxu0 %v339
        %741 = vmatmul.bf16.gmra.mxu0 %v276
        %v742 = vpop.f32.mrf.mxu0
        %v743 = vadd.f32 %v223, %v742
        %v744 = vpop.f32.mrf.mxu0
        %745 = vdwg.mxu0
        %746 = vmatpush.bf16.msra.mxu0 0
        %747 = vmatpush.bf16.msra.mxu0 0
        %748 = vmatpush.bf16.msra.mxu0 0
        %749 = vmatpush.bf16.msra.mxu0 0
        %750 = vmatpush.bf16.msra.mxu0 0
        %751 = vmatpush.bf16.msra.mxu0 0
        %752 = vmatpush.bf16.msra.mxu0 0
        %753 = vmatpush.bf16.msra.mxu0 %v341
        %754 = vmatmul.bf16.gmra.mxu0 %v276
        %v755 = vpop.f32.mrf.mxu0
        %v756 = vadd.f32 %v223, %v755
        %v757 = vpop.f32.mrf.mxu0
        %758 = vdwg.mxu0
        %759 = vst [vmem:[%s206] sm:$0xff] %v353
        %760 = vst [vmem:[%s206 + $0x8] sm:$0xff] %v366
        %761 = vst [vmem:[%s206 + $0x10] sm:$0xff] %v379
        %762 = vst [vmem:[%s206 + $0x18] sm:$0xff] %v392
        %763 = vst [vmem:[%s206 + $0x20] sm:$0xff] %v405
        %764 = vst [vmem:[%s206 + $0x28] sm:$0xff] %v418
        %765 = vst [vmem:[%s206 + $0x30] sm:$0xff] %v431
        %766 = vst [vmem:[%s206 + $0x38] sm:$0xff] %v444
        %767 = vst [vmem:[%s206 + $0x40] sm:$0xff] %v457
        %768 = vst [vmem:[%s206 + $0x48] sm:$0xff] %v470
        %769 = vst [vmem:[%s206 + $0x50] sm:$0xff] %v483
        %770 = vst [vmem:[%s206 + $0x58] sm:$0xff] %v496
        %771 = vst [vmem:[%s206 + $0x60] sm:$0xff] %v509
        %772 = vst [vmem:[%s206 + $0x68] sm:$0xff] %v522
        %773 = vst [vmem:[%s206 + $0x70] sm:$0xff] %v535
        %774 = vst [vmem:[%s206 + $0x78] sm:$0xff] %v548
        %775 = vst [vmem:[%s206 + $0x80] sm:$0xff] %v561
        %776 = vst [vmem:[%s206 + $0x88] sm:$0xff] %v574
        %777 = vst [vmem:[%s206 + $0x90] sm:$0xff] %v587
        %778 = vst [vmem:[%s206 + $0x98] sm:$0xff] %v600
        %779 = vst [vmem:[%s206 + $0xa0] sm:$0xff] %v613
        %780 = vst [vmem:[%s206 + $0xa8] sm:$0xff] %v626
        %781 = vst [vmem:[%s206 + $0xb0] sm:$0xff] %v639
        %782 = vst [vmem:[%s206 + $0xb8] sm:$0xff] %v652
        %783 = vst [vmem:[%s206 + $0xc0] sm:$0xff] %v665
        %784 = vst [vmem:[%s206 + $0xc8] sm:$0xff] %v678
        %785 = vst [vmem:[%s206 + $0xd0] sm:$0xff] %v691
        %786 = vst [vmem:[%s206 + $0xd8] sm:$0xff] %v704
        %787 = vst [vmem:[%s206 + $0xe0] sm:$0xff] %v717
        %788 = vst [vmem:[%s206 + $0xe8] sm:$0xff] %v730
        %789 = vst [vmem:[%s206 + $0xf0] sm:$0xff] %v743
        %790 = vst [vmem:[%s206 + $0xf8] sm:$0xff] %v756
        %s791 = sand.u32 %s112, 1
        %s792 = scalar_lea.sflag [#allocation4], %s791
        %s793 = sand.u32 %s112, 1
        %s794 = smul.addr %s793, 256
        %s795 = scalar_lea.vmem [#allocation5], %s794
        // Predicated region
        $region37: #{tpu_custom_call.1} parent=31 // pred_check
          %p796 = pneg %p122
        $region38: #{tpu_custom_call.1} parent=31 // pred_check_branch
          %798 = sbr.rel (%p796) target = $region40
        $region39: #{tpu_custom_call.1} parent=31 // pred_region
          %s799 = smul.u32 32, %s25
          %801 = vsyncadd %s792, 0
          %s802 = smul.addr %s24, 32
          %s803 = sadd.s32 %s799, %s802
          %s804 = smul.addr %s803, 8
          %s805 = scalar_lea.hbm %s3, %s804
          %s807 = sshll.u32 %s795, 4
          %s808 = int_to_ptr.vmem [resolvable:$true] %s807
          %s809 = sshll.u32 %s805, 4
          %s810 = int_to_ptr.hbm [resolvable:$true] %s809
          %812 = dma.vmem_to_hbm [thread:$0]  %s808, 4096, %s810, %s792
        $region40: #{tpu_custom_call.1} parent=31 // pred_fallthru
          _
      $region32: #{tpu_custom_call.1} parent=5 // pred_fallthru
        _
      %p813 = scmp.le.s32.totalorder 2, %s15
      // Predicated region
      $region41: #{tpu_custom_call.1} parent=5 // pred_check
        %p814 = pneg %p813
      $region42: #{tpu_custom_call.1} parent=5 // pred_check_branch
        %816 = sbr.rel (%p814) target = $region44
      $region43: #{tpu_custom_call.1} parent=5 // pred_region
        %s817 = ssub.s32 %s15, 2
        // Predicated region
        $region45: #{tpu_custom_call.1} parent=43 // pred_check
          %p818 = pneg %p128
        $region46: #{tpu_custom_call.1} parent=43 // pred_check_branch
          %820 = sbr.rel (%p818) target = $region48
        $region47: #{tpu_custom_call.1} parent=43 // pred_region
          %s821 = sand.u32 %s113, 1
          %s822 = scalar_lea.sflag [#allocation4], %s821
          %s823 = sand.u32 %s113, 1
          %s824 = smul.addr %s823, 256
          %s825 = scalar_lea.vmem [#allocation5], %s824
          %827 = dma.done %s822, 4096
        $region48: #{tpu_custom_call.1} parent=43 // pred_fallthru
          _
      $region44: #{tpu_custom_call.1} parent=5 // pred_fallthru
        _
    $region6: #{tpu_custom_call.1} parent=1 // loop_footer
      %s19 = sadd.s32 1, %s15
    $region7: #{tpu_custom_call.1} parent=1 // loop_footer_branch
      %14 = sbr.rel target = $region3
    $region8: #{tpu_custom_call.1} parent=1 // loop_exit
      _
    %828 = vsyncpa [#allocation3], 1
    %s829 = scalar_lea.sflag [#allocation3], 1
    %830 = vsyncpa %s829, 1
    %831 = vsyncpa [#allocation4], 1
    %s832 = scalar_lea.sflag [#allocation4], 1
    %833 = vsyncpa %s832, 1

</llo_original>
